<compile_context>
chip_gen: v7x
topology: tpu7x:2x2x1
jax: 0.10.0
libtpu: 0.0.40
codegen_flags: <defaults>
</compile_context>

<pallas_src>
import math

import jax
import jax.numpy as jnp
from jax import lax
from jax.experimental import pallas as pl
from jax.experimental.pallas import tpu as pltpu


def _attn_kernel(q_ref, k_ref, v_ref, mask_ref, o_ref):
    # Per-grid-step (one batch element) refs, batch dim squeezed out:
    #   q: (S, D)   k: (SK, D)   v: (SK, D+1)   mask: (S, SK)   o: (S, D)
    d = q_ref.shape[-1]
    scale = 1.0 / math.sqrt(d)

    q = q_ref[...] * scale          # fold 1/sqrt(d) into q (S*D elems, not S*SK)
    k = k_ref[...]
    v = v_ref[...]                  # last column is 1.0 for real keys, 0.0 for pad
    m = mask_ref[...]               # padded key columns are -inf

    # q @ k^T without materializing k.T: contract D (dim 1) against D (dim 1).
    qk = lax.dot_general(
        q, k,
        dimension_numbers=(((1,), (1,)), ((), ())),
        preferred_element_type=jnp.float32,
    ) + m                                                    # (S, SK)

    # Numerically stable softmax; padded lanes exp to exactly 0 (-inf mask).
    qk_max = jnp.max(qk, axis=-1, keepdims=True)             # (S, 1)
    p = jnp.exp(qk - qk_max)                                 # (S, SK), f32

    # Single matmul produces both the unnormalized output and the softmax
    # denominator (the ones column of v rides the contraction on the MXU).
    out_aug = jnp.dot(p, v, preferred_element_type=jnp.float32)   # (S, D+1)
    out = out_aug[:, :d]                                     # (S, D)
    denom = out_aug[:, d:]                                   # (S, 1)

    # EUP approximate reciprocal + one Newton-Raphson refinement.
    r = pl.reciprocal(denom, approx=True)
    r = r * (2.0 - denom * r)

    o_ref[...] = (out * r).astype(o_ref.dtype)


def masked_attention(q, k, v, mask):
    """Pallas TPU implementation of: softmax(q @ k^T / sqrt(d) + mask) @ v."""
    B, S, D = q.shape
    assert k.shape == (B, S, D) and v.shape == (B, S, D)
    assert mask.shape == (1, S, S)

    # Pad the key axis to a lane-dense multiple of 128 and append a ones column
    # to v so the softmax denominator comes out of the second matmul.
    SK = pl.cdiv(S, 128) * 128
    pad = SK - S

    k_pad = jnp.pad(k, ((0, 0), (0, pad), (0, 0)))
    v_aug = jnp.pad(
        jnp.concatenate([v, jnp.ones((B, S, 1), v.dtype)], axis=-1),
        ((0, 0), (0, pad), (0, 0)),
    )                                                        # (B, SK, D+1)
    mask_pad = jnp.pad(
        mask.astype(jnp.float32),
        ((0, 0), (0, 0), (0, pad)),
        constant_values=-jnp.inf,                            # exp -> exactly 0
    )                                                        # (1, S, SK)

    itemsize = jnp.dtype(q.dtype).itemsize
    cost = pl.CostEstimate(
        flops=2 * B * S * SK * (2 * D + 1),                  # qk^T and p@v_aug
        transcendentals=B * S * SK,                          # exp
        bytes_accessed=itemsize
        * (B * S * D + B * SK * D + B * SK * (D + 1) + S * SK + B * S * D),
    )

    grid_spec = pltpu.PrefetchScalarGridSpec(
        num_scalar_prefetch=0,
        grid=(B,),
        in_specs=[
            pl.BlockSpec((None, S, D), lambda b: (b, 0, 0)),        # q
            pl.BlockSpec((None, SK, D), lambda b: (b, 0, 0)),       # k (padded)
            pl.BlockSpec((None, SK, D + 1), lambda b: (b, 0, 0)),   # v (+ ones col)
            pl.BlockSpec((None, S, SK), lambda b: (0, 0, 0)),       # mask (bcast B)
        ],
        out_specs=pl.BlockSpec((None, S, D), lambda b: (b, 0, 0)),
    )

    return pl.pallas_call(
        _attn_kernel,
        out_shape=jax.ShapeDtypeStruct((B, S, D), q.dtype),
        grid_spec=grid_spec,
        compiler_params=pltpu.CompilerParams(
            dimension_semantics=("parallel",),
        ),
        cost_estimate=cost,
    )(q, k_pad, v_aug, mask_pad)


def _reference(q, k, v, mask):
    d = q.shape[-1]
    qk = jnp.einsum("bqd,bkd->bqk", q, k) / math.sqrt(d) + mask
    attn = jax.nn.softmax(qk, axis=-1)
    return jnp.einsum("bqk,bkd->bqd", attn, v)


if __name__ == "__main__":
    # Small shapes consistent with the module (its global mask used S=56).
    B, S, D = 2, 56, 32

    key = jax.random.PRNGKey(0)
    kq, kk, kv, km = jax.random.split(key, 4)

    q = jax.random.normal(kq, (B, S, D), dtype=jnp.float32)
    k = jax.random.normal(kk, (B, S, D), dtype=jnp.float32)
    v = jax.random.normal(kv, (B, S, D), dtype=jnp.float32)

    # Additive attention mask: -1e9 at ~30% of positions, 0 elsewhere.
    # (Forward only does `qk + mask`, so a general additive float mask covers
    #  the original snippet's bool-mask .fill_() quirk.)
    mask = jnp.where(
        jax.random.uniform(km, (1, S, S)) > 0.7,
        jnp.float32(-1.0e9),
        jnp.float32(0.0),
    )

    out = jax.block_until_ready(masked_attention(q, k, v, mask))

    ref = _reference(q, k, v, mask)
    assert out.shape == (B, S, D)
    assert jnp.allclose(out, ref, atol=1e-5, rtol=1e-5), (
        f"max abs err = {jnp.max(jnp.abs(out - ref))}"
    )
    print("KERNEL_OK")
</pallas_src>

<mosaic_0001>
module attributes {stable_mosaic.version = 11 : i64} {
  func.func @_attn_kernel(%arg0: i32, %arg1: memref<1x56x32xf32, #tpu.memory_space<vmem>>, %arg2: memref<1x128x32xf32, #tpu.memory_space<vmem>>, %arg3: memref<1x128x33xf32, #tpu.memory_space<vmem>>, %arg4: memref<1x56x128xf32, #tpu.memory_space<vmem>>, %arg5: memref<1x56x32xf32, #tpu.memory_space<vmem>>) attributes {dimension_semantics = [#tpu.dimension_semantics<parallel>], iteration_bounds = array<i64: 2>, scalar_prefetch = 0 : i64, scratch_operands = 0 : i64, tpu.core_type = #tpu.core_type<tc>, window_params = [{transform_indices = @transform_0, window_bounds = array<i64: 1, 56, 32>}, {transform_indices = @transform_1, window_bounds = array<i64: 1, 128, 32>}, {transform_indices = @transform_2, window_bounds = array<i64: 1, 128, 33>}, {pipeline_mode = #tpu.pipeline_mode<synchronous>, transform_indices = @transform_3, window_bounds = array<i64: 1, 56, 128>}, {transform_indices = @transform_4, window_bounds = array<i64: 1, 56, 32>}]} {
    %c0 = arith.constant 0 : index
    %c0_0 = arith.constant 0 : index
    %c0_1 = arith.constant 0 : index
    %0 = vector.load %arg1[%c0, %c0_0, %c0_1] : memref<1x56x32xf32, #tpu.memory_space<vmem>>, vector<1x56x32xf32>
    %1 = vector.shape_cast %0 : vector<1x56x32xf32> to vector<56x32xf32>
    %cst = arith.constant 0.176776692 : f32
    %2 = vector.broadcast %cst : f32 to vector<56x32xf32>
    %3 = arith.mulf %1, %2 : vector<56x32xf32>
    %c0_2 = arith.constant 0 : index
    %c0_3 = arith.constant 0 : index
    %c0_4 = arith.constant 0 : index
    %4 = vector.load %arg2[%c0_2, %c0_3, %c0_4] : memref<1x128x32xf32, #tpu.memory_space<vmem>>, vector<1x128x32xf32>
    %5 = vector.shape_cast %4 : vector<1x128x32xf32> to vector<128x32xf32>
    %c0_5 = arith.constant 0 : index
    %c0_6 = arith.constant 0 : index
    %c0_7 = arith.constant 0 : index
    %6 = vector.load %arg3[%c0_5, %c0_6, %c0_7] : memref<1x128x33xf32, #tpu.memory_space<vmem>>, vector<1x128x33xf32>
    %7 = vector.shape_cast %6 : vector<1x128x33xf32> to vector<128x33xf32>
    %c0_8 = arith.constant 0 : index
    %c0_9 = arith.constant 0 : index
    %c0_10 = arith.constant 0 : index
    %8 = vector.load %arg4[%c0_8, %c0_9, %c0_10] : memref<1x56x128xf32, #tpu.memory_space<vmem>>, vector<1x56x128xf32>
    %9 = vector.shape_cast %8 : vector<1x56x128xf32> to vector<56x128xf32>
    %cst_11 = arith.constant dense<0.000000e+00> : vector<56x128xf32>
    %10 = tpu.matmul %3, %5, %cst_11 {dimension_numbers = #tpu.dot_dimension_numbers<[1], [1], [0], [0], [0, 0, 1, 0], [], []>} : vector<56x32xf32>, vector<128x32xf32>, vector<56x128xf32> -> vector<56x128xf32>
    %11 = arith.addf %10, %9 : vector<56x128xf32>
    %cst_12 = arith.constant dense<0xFF800000> : vector<56xf32>
    %12 = vector.multi_reduction <maximumf>, %11, %cst_12 [1] : vector<56x128xf32> to vector<56xf32>
    %13 = vector.shape_cast %12 : vector<56xf32> to vector<56x1xf32>
    %14 = vector.broadcast %13 : vector<56x1xf32> to vector<56x128xf32>
    %15 = arith.subf %11, %14 : vector<56x128xf32>
    %16 = math.exp %15 : vector<56x128xf32>
    %cst_13 = arith.constant dense<0.000000e+00> : vector<56x33xf32>
    %17 = tpu.matmul %16, %7, %cst_13 {dimension_numbers = #tpu.dot_dimension_numbers<[1], [0], [0], [1], [0, 0, 1, 1], [], []>} : vector<56x128xf32>, vector<128x33xf32>, vector<56x33xf32> -> vector<56x33xf32>
    %18 = vector.extract_strided_slice %17 {offsets = [0, 0], sizes = [56, 32], strides = [1, 1]} : vector<56x33xf32> to vector<56x32xf32>
    %19 = vector.extract_strided_slice %17 {offsets = [0, 32], sizes = [56, 1], strides = [1, 1]} : vector<56x33xf32> to vector<56x1xf32>
    %20 = tpu.reciprocal %19 {approx = true} : vector<56x1xf32> -> vector<56x1xf32>
    %21 = arith.mulf %19, %20 : vector<56x1xf32>
    %cst_14 = arith.constant 2.000000e+00 : f32
    %22 = vector.broadcast %cst_14 : f32 to vector<56x1xf32>
    %23 = arith.subf %22, %21 : vector<56x1xf32>
    %24 = arith.mulf %20, %23 : vector<56x1xf32>
    %25 = vector.broadcast %24 : vector<56x1xf32> to vector<56x32xf32>
    %26 = arith.mulf %18, %25 : vector<56x32xf32>
    %c0_15 = arith.constant 0 : index
    %c0_16 = arith.constant 0 : index
    %c0_17 = arith.constant 0 : index
    %27 = vector.load %arg5[%c0_15, %c0_16, %c0_17] : memref<1x56x32xf32, #tpu.memory_space<vmem>>, vector<1x56x32xf32>
    %28 = vector.shape_cast %27 : vector<1x56x32xf32> to vector<56x32xf32>
    %29 = vector.shape_cast %26 : vector<56x32xf32> to vector<1x56x32xf32>
    tpu.vector_store %arg5[%c0_15, %c0_16, %c0_17], %29 {strides = array<i32>} : memref<1x56x32xf32, #tpu.memory_space<vmem>>, vector<1x56x32xf32>,
    return
  }
  func.func @transform_0(%arg0: i32) -> (i32, i32, i32) {
    %c0_i32 = arith.constant 0 : i32
    %c0_i32_0 = arith.constant 0 : i32
    %c0_i32_1 = arith.constant 0 : i32
    return %arg0, %c0_i32, %c0_i32_0 : i32, i32, i32
  }
  func.func @transform_1(%arg0: i32) -> (i32, i32, i32) {
    %c0_i32 = arith.constant 0 : i32
    %c0_i32_0 = arith.constant 0 : i32
    %c0_i32_1 = arith.constant 0 : i32
    return %arg0, %c0_i32, %c0_i32_0 : i32, i32, i32
  }
  func.func @transform_2(%arg0: i32) -> (i32, i32, i32) {
    %c0_i32 = arith.constant 0 : i32
    %c0_i32_0 = arith.constant 0 : i32
    %c0_i32_1 = arith.constant 0 : i32
    return %arg0, %c0_i32, %c0_i32_0 : i32, i32, i32
  }
  func.func @transform_3(%arg0: i32) -> (i32, i32, i32) {
    %c0_i32 = arith.constant 0 : i32
    %c0_i32_0 = arith.constant 0 : i32
    %c0_i32_1 = arith.constant 0 : i32
    %c0_i32_2 = arith.constant 0 : i32
    return %c0_i32, %c0_i32_0, %c0_i32_1 : i32, i32, i32
  }
  func.func @transform_4(%arg0: i32) -> (i32, i32, i32) {
    %c0_i32 = arith.constant 0 : i32
    %c0_i32_0 = arith.constant 0 : i32
    %c0_i32_1 = arith.constant 0 : i32
    return %arg0, %c0_i32, %c0_i32_0 : i32, i32, i32
  }
}

</mosaic_0001>

<llo_original>
// kernel: tpu_custom_call.1
$region0: #{tpu_custom_call.1}
  #allocation0 [shape = 'u32[]', space=smem, size = 0x4, offset = 0x4, fixed_abs, tag = 'smem constant byte address 0x4 - core index']
  #allocation1 [shape = 'u32[144,128]{1,0:T(1,128)}', space=vmem, size = 0x12000, scoped, tag = 'internal scratch']
  %s0 = inlined_call_operand.vmem [shape: f32[2,56,32], index: 0, kind: input, shape index: {}]
  %s1 = inlined_call_operand.vmem [shape: f32[2,128,32], index: 1, kind: input, shape index: {}]
  %s2 = inlined_call_operand.vmem [shape: f32[2,128,33], index: 2, kind: input, shape index: {}]
  %s3 = inlined_call_operand.vmem [shape: f32[1,56,128], index: 3, kind: input, shape index: {}]
  %s4 = inlined_call_operand.vmem [shape: f32[2,56,32], index: 4, kind: output, shape index: {}]
  %s5 = sld [smem:[#allocation0]]
  $region49: #{tpu_custom_call.1} parent=0
    _
  %s7 = ssub.s32 1, %s5
  %s8 = scalar_select 0, %s7, %s5
  loop: start=0, step=1, limit=4
  $region2: #{tpu_custom_call.1} parent=0 // loop_pre_header
    _
  $region3: #{tpu_custom_call.1} parent=0 // loop_header
    %s10 = sphi 0, %s14
    %p11 = scmp.ge.s32.totalorder %s10, 4
    %s20 = sphi 0, %s22
    %s23 = sphi 0, %s20
    %s24 = sphi 0, %s23
    %s40 = sphi 0, %s24
    %s46 = sphi 0, %s48
    %s49 = sphi 0, %s46
    %s50 = sphi 0, %s49
    %s66 = sphi 0, %s50
    %s72 = sphi 0, %s74
    %s75 = sphi 0, %s72
    %s76 = sphi 0, %s75
    %s92 = sphi 0, %s76
    %s96 = sphi 0, %s96
    %s98 = sphi 0, %s96
    %s99 = sphi 0, %s98
    %s113 = sphi 0, %s99
    %s119 = sphi 0, %s121
    %s122 = sphi 0, %s119
    %s123 = sphi 0, %s122
    %s139 = sphi 0, %s123
  $region4: #{tpu_custom_call.1} parent=0 // loop_header_branch
    %13 = sbr.rel (%p11) target = $region8
  $region5: #{tpu_custom_call.1} parent=0 // loop_body
    %s15 = ssub.s32 %s10, 1
    %s16 = ssub.s32 %s10, 2
    %s17 = sadd.s32 %s10, 1
    %s18 = ssub.s32 %s10, %s17
    %p19 = scmp.eq.s32.totalorder %s18, 0
    %s21 = sadd.s32 %s20, 1
    %s22 = scalar_select %p19, %s20, %s21
    %p25 = pneg %p19
    %p26 = scmp.eq.s32.totalorder %s10, 1
    %p27 = por %p25, %p26
    %p28 = scmp.ne.s32.totalorder %s20, %s23
    %p29 = scmp.eq.s32.totalorder %s10, 0
    %p30 = por %p28, %p29
    %p31 = scmp.ne.s32.totalorder %s20, %s23
    %p32 = scmp.eq.s32.totalorder %s15, 1
    %p33 = por %p31, %p32
    %p34 = scmp.ne.s32.totalorder %s23, %s24
    %p35 = scmp.eq.s32.totalorder %s15, 0
    %p36 = por %p34, %p35
    %p37 = scmp.ne.s32.totalorder %s23, %s24
    %p38 = scmp.eq.s32.totalorder %s16, 1
    %p39 = por %p37, %p38
    %p41 = scmp.ne.s32.totalorder %s24, %s40
    %p42 = scmp.eq.s32.totalorder %s16, 0
    %p43 = por %p41, %p42
    %s44 = ssub.s32 %s10, %s17
    %p45 = scmp.eq.s32.totalorder %s44, 0
    %s47 = sadd.s32 %s46, 1
    %s48 = scalar_select %p45, %s46, %s47
    %p51 = pneg %p45
    %p52 = scmp.eq.s32.totalorder %s10, 1
    %p53 = por %p51, %p52
    %p54 = scmp.ne.s32.totalorder %s46, %s49
    %p55 = scmp.eq.s32.totalorder %s10, 0
    %p56 = por %p54, %p55
    %p57 = scmp.ne.s32.totalorder %s46, %s49
    %p58 = scmp.eq.s32.totalorder %s15, 1
    %p59 = por %p57, %p58
    %p60 = scmp.ne.s32.totalorder %s49, %s50
    %p61 = scmp.eq.s32.totalorder %s15, 0
    %p62 = por %p60, %p61
    %p63 = scmp.ne.s32.totalorder %s49, %s50
    %p64 = scmp.eq.s32.totalorder %s16, 1
    %p65 = por %p63, %p64
    %p67 = scmp.ne.s32.totalorder %s50, %s66
    %p68 = scmp.eq.s32.totalorder %s16, 0
    %p69 = por %p67, %p68
    %s70 = ssub.s32 %s10, %s17
    %p71 = scmp.eq.s32.totalorder %s70, 0
    %s73 = sadd.s32 %s72, 1
    %s74 = scalar_select %p71, %s72, %s73
    %p77 = pneg %p71
    %p78 = scmp.eq.s32.totalorder %s10, 1
    %p79 = por %p77, %p78
    %p80 = scmp.ne.s32.totalorder %s72, %s75
    %p81 = scmp.eq.s32.totalorder %s10, 0
    %p82 = por %p80, %p81
    %p83 = scmp.ne.s32.totalorder %s72, %s75
    %p84 = scmp.eq.s32.totalorder %s15, 1
    %p85 = por %p83, %p84
    %p86 = scmp.ne.s32.totalorder %s75, %s76
    %p87 = scmp.eq.s32.totalorder %s15, 0
    %p88 = por %p86, %p87
    %p89 = scmp.ne.s32.totalorder %s75, %s76
    %p90 = scmp.eq.s32.totalorder %s16, 1
    %p91 = por %p89, %p90
    %p93 = scmp.ne.s32.totalorder %s76, %s92
    %p94 = scmp.eq.s32.totalorder %s16, 0
    %p95 = por %p93, %p94
    %s97 = sadd.s32 %s96, 1
    %p100 = scmp.eq.s32.totalorder %s10, 1
    %p101 = scmp.ne.s32.totalorder %s96, %s98
    %p102 = scmp.eq.s32.totalorder %s10, 0
    %p103 = por %p101, %p102
    %p104 = scmp.ne.s32.totalorder %s96, %s98
    %p105 = scmp.eq.s32.totalorder %s15, 1
    %p106 = por %p104, %p105
    %p107 = scmp.ne.s32.totalorder %s98, %s99
    %p108 = scmp.eq.s32.totalorder %s15, 0
    %p109 = por %p107, %p108
    %p110 = scmp.ne.s32.totalorder %s98, %s99
    %p111 = scmp.eq.s32.totalorder %s16, 1
    %p112 = por %p110, %p111
    %p114 = scmp.ne.s32.totalorder %s99, %s113
    %p115 = scmp.eq.s32.totalorder %s16, 0
    %p116 = por %p114, %p115
    %s117 = ssub.s32 %s10, %s17
    %p118 = scmp.eq.s32.totalorder %s117, 0
    %s120 = sadd.s32 %s119, 1
    %s121 = scalar_select %p118, %s119, %s120
    %p124 = pneg %p118
    %p125 = scmp.eq.s32.totalorder %s10, 1
    %p126 = por %p124, %p125
    %p127 = scmp.ne.s32.totalorder %s119, %s122
    %p128 = scmp.eq.s32.totalorder %s10, 0
    %p129 = por %p127, %p128
    %p130 = scmp.ne.s32.totalorder %s119, %s122
    %p131 = scmp.eq.s32.totalorder %s15, 1
    %p132 = por %p130, %p131
    %p133 = scmp.ne.s32.totalorder %s122, %s123
    %p134 = scmp.eq.s32.totalorder %s15, 0
    %p135 = por %p133, %p134
    %p136 = scmp.ne.s32.totalorder %s122, %s123
    %p137 = scmp.eq.s32.totalorder %s16, 1
    %p138 = por %p136, %p137
    %p140 = scmp.ne.s32.totalorder %s123, %s139
    %p141 = scmp.eq.s32.totalorder %s16, 0
    %p142 = por %p140, %p141
    %p143 = scmp.le.s32.totalorder 1, %s10
    %p144 = scmp.lt.s32.totalorder %s10, 3
    %p145 = pnand %p143, %p144
    %p146 = pneg %p145
    // Predicated region
    $region9: #{tpu_custom_call.1} parent=5 // pred_check
      _
    $region10: #{tpu_custom_call.1} parent=5 // pred_check_branch
      %148 = sbr.rel (%p145) target = $region12
    $region11: #{tpu_custom_call.1} parent=5 // pred_region
      %s149 = ssub.s32 %s10, 1
      // Predicated region
      $region13: #{tpu_custom_call.1} parent=11 // pred_check
        %p150 = pneg %p109
      $region14: #{tpu_custom_call.1} parent=11 // pred_check_branch
        %152 = sbr.rel (%p150) target = $region16
      $region15: #{tpu_custom_call.1} parent=11 // pred_region
        _
      $region16: #{tpu_custom_call.1} parent=11 // pred_fallthru
        _
    $region12: #{tpu_custom_call.1} parent=5 // pred_fallthru
      _
    %p153 = scmp.lt.s32.totalorder %s10, 2
    // Predicated region
    $region17: #{tpu_custom_call.1} parent=5 // pred_check
      %p154 = pneg %p153
    $region18: #{tpu_custom_call.1} parent=5 // pred_check_branch
      %156 = sbr.rel (%p154) target = $region20
    $region19: #{tpu_custom_call.1} parent=5 // pred_region
      // Predicated region
      $region21: #{tpu_custom_call.1} parent=19 // pred_check
        %p157 = pneg %p30
      $region22: #{tpu_custom_call.1} parent=19 // pred_check_branch
        %159 = sbr.rel (%p157) target = $region24
      $region23: #{tpu_custom_call.1} parent=19 // pred_region
        %p160 = scmp.lt.s32.totalorder %s10, 1
        %s161 = scalar_select %p160, %s10, 1
        %s162 = smul.addr %s161, 7
        %s163 = smul.addr %s162, 8
        %s164 = scalar_lea.vmem %s0, %s163
      $region24: #{tpu_custom_call.1} parent=19 // pred_fallthru
        _
      // Predicated region
      $region25: #{tpu_custom_call.1} parent=19 // pred_check
        %p165 = pneg %p56
      $region26: #{tpu_custom_call.1} parent=19 // pred_check_branch
        %167 = sbr.rel (%p165) target = $region28
      $region27: #{tpu_custom_call.1} parent=19 // pred_region
        %p168 = scmp.lt.s32.totalorder %s10, 1
        %s169 = scalar_select %p168, %s10, 1
        %s170 = smul.addr %s169, 16
        %s171 = smul.addr %s170, 8
        %s172 = scalar_lea.vmem %s1, %s171
      $region28: #{tpu_custom_call.1} parent=19 // pred_fallthru
        _
      // Predicated region
      $region29: #{tpu_custom_call.1} parent=19 // pred_check
        %p173 = pneg %p82
      $region30: #{tpu_custom_call.1} parent=19 // pred_check_branch
        %175 = sbr.rel (%p173) target = $region32
      $region31: #{tpu_custom_call.1} parent=19 // pred_region
        %p176 = scmp.lt.s32.totalorder %s10, 1
        %s177 = scalar_select %p176, %s10, 1
        %s178 = smul.addr %s177, 16
        %s179 = smul.addr %s178, 8
        %s180 = scalar_lea.vmem %s2, %s179
      $region32: #{tpu_custom_call.1} parent=19 // pred_fallthru
        _
    $region20: #{tpu_custom_call.1} parent=5 // pred_fallthru
      _
    %p181 = scmp.le.s32.totalorder 1, %s10
    %p182 = scmp.lt.s32.totalorder %s10, 3
    %p183 = pnand %p181, %p182
    %p184 = pneg %p183
    // Predicated region
    $region33: #{tpu_custom_call.1} parent=5 // pred_check
      _
    $region34: #{tpu_custom_call.1} parent=5 // pred_check_branch
      %186 = sbr.rel (%p183) target = $region36
    $region35: #{tpu_custom_call.1} parent=5 // pred_region
      %s187 = ssub.s32 %s10, 1
      %p188 = scmp.lt.s32.totalorder %s15, 1
      %s189 = scalar_select %p188, %s15, 1
      %s190 = smul.addr %s189, 7
      %s191 = smul.addr %s190, 8
      %s192 = scalar_lea.vmem %s0, %s191
      %p193 = pneg %p36
      %p194 = pneg %p33
      %p195 = scmp.lt.s32.totalorder %s15, 1
      %s196 = scalar_select %p195, %s15, 1
      %s197 = smul.addr %s196, 16
      %s198 = smul.addr %s197, 8
      %s199 = scalar_lea.vmem %s1, %s198
      %p200 = pneg %p62
      %p201 = pneg %p59
      %p202 = scmp.lt.s32.totalorder %s15, 1
      %s203 = scalar_select %p202, %s15, 1
      %s204 = smul.addr %s203, 16
      %s205 = smul.addr %s204, 8
      %s206 = scalar_lea.vmem %s2, %s205
      %p207 = pneg %p88
      %p208 = pneg %p85
      %p209 = pneg %p109
      %p210 = pneg %p106
      %p211 = pneg %p135
      %p212 = pneg %p132
      %p213 = scmp.lt.s32.totalorder %s15, 1
      %s214 = scalar_select %p213, %s15, 1
      %s215 = smul.addr %s214, 7
      %s216 = smul.addr %s215, 8
      %s217 = scalar_lea.vmem %s4, %s216
      %p218 = scmp.lt.s32.totalorder %s15, 1
      %s219 = scalar_select %p218, %s15, 1
      %s220 = smul.addr %s219, 7
      %s221 = smul.addr %s220, 8
      %s222 = scalar_lea.vmem %s0, %s221
      %p223 = scmp.lt.s32.totalorder %s15, 1
      %s224 = scalar_select %p223, %s15, 1
      %s225 = smul.addr %s224, 16
      %s226 = smul.addr %s225, 8
      %s227 = scalar_lea.vmem %s1, %s226
      %p228 = scmp.lt.s32.totalorder %s15, 1
      %s229 = scalar_select %p228, %s15, 1
      %s230 = smul.addr %s229, 16
      %s231 = smul.addr %s230, 8
      %s232 = scalar_lea.vmem %s2, %s231
      %p233 = scmp.lt.s32.totalorder %s15, 1
      %s234 = scalar_select %p233, %s15, 1
      %s235 = smul.addr %s234, 7
      %s236 = smul.addr %s235, 8
      %s237 = scalar_lea.vmem %s4, %s236
      %v238 = vld [vmem:[%s222] sm:$0xff]
      %v239 = vld [vmem:[%s222 + $0x8] sm:$0xff]
      %v240 = vld [vmem:[%s222 + $0x10] sm:$0xff]
      %v241 = vld [vmem:[%s222 + $0x18] sm:$0xff]
      %v242 = vld [vmem:[%s222 + $0x20] sm:$0xff]
      %v243 = vld [vmem:[%s222 + $0x28] sm:$0xff]
      %v244 = vld [vmem:[%s222 + $0x30] sm:$0xff]
      %v245 = vmul.f32 %v238, 0.17677669
      %v246 = vmul.f32 %v239, 0.17677669
      %v247 = vmul.f32 %v240, 0.17677669
      %v248 = vmul.f32 %v241, 0.17677669
      %v249 = vmul.f32 %v242, 0.17677669
      %v250 = vmul.f32 %v243, 0.17677669
      %v251 = vmul.f32 %v244, 0.17677669
      %v252 = vld [vmem:[%s227] sm:$0xff]
      %v253 = vld [vmem:[%s227 + $0x8] sm:$0xff]
      %v254 = vld [vmem:[%s227 + $0x10] sm:$0xff]
      %v255 = vld [vmem:[%s227 + $0x18] sm:$0xff]
      %v256 = vld [vmem:[%s227 + $0x20] sm:$0xff]
      %v257 = vld [vmem:[%s227 + $0x28] sm:$0xff]
      %v258 = vld [vmem:[%s227 + $0x30] sm:$0xff]
      %v259 = vld [vmem:[%s227 + $0x38] sm:$0xff]
      %v260 = vld [vmem:[%s227 + $0x40] sm:$0xff]
      %v261 = vld [vmem:[%s227 + $0x48] sm:$0xff]
      %v262 = vld [vmem:[%s227 + $0x50] sm:$0xff]
      %v263 = vld [vmem:[%s227 + $0x58] sm:$0xff]
      %v264 = vld [vmem:[%s227 + $0x60] sm:$0xff]
      %v265 = vld [vmem:[%s227 + $0x68] sm:$0xff]
      %v266 = vld [vmem:[%s227 + $0x70] sm:$0xff]
      %v267 = vld [vmem:[%s227 + $0x78] sm:$0xff]
      %v268 = vld [vmem:[%s232] sm:$0xff]
      %v269 = vld [vmem:[%s232 + $0x8] sm:$0xff]
      %v270 = vld [vmem:[%s232 + $0x10] sm:$0xff]
      %v271 = vld [vmem:[%s232 + $0x18] sm:$0xff]
      %v272 = vld [vmem:[%s232 + $0x20] sm:$0xff]
      %v273 = vld [vmem:[%s232 + $0x28] sm:$0xff]
      %v274 = vld [vmem:[%s232 + $0x30] sm:$0xff]
      %v275 = vld [vmem:[%s232 + $0x38] sm:$0xff]
      %v276 = vld [vmem:[%s232 + $0x40] sm:$0xff]
      %v277 = vld [vmem:[%s232 + $0x48] sm:$0xff]
      %v278 = vld [vmem:[%s232 + $0x50] sm:$0xff]
      %v279 = vld [vmem:[%s232 + $0x58] sm:$0xff]
      %v280 = vld [vmem:[%s232 + $0x60] sm:$0xff]
      %v281 = vld [vmem:[%s232 + $0x68] sm:$0xff]
      %v282 = vld [vmem:[%s232 + $0x70] sm:$0xff]
      %v283 = vld [vmem:[%s232 + $0x78] sm:$0xff]
      %v284 = vld [vmem:[%s3] sm:$0xff]
      %v285 = vld [vmem:[%s3 + $0x8] sm:$0xff]
      %v286 = vld [vmem:[%s3 + $0x10] sm:$0xff]
      %v287 = vld [vmem:[%s3 + $0x18] sm:$0xff]
      %v288 = vld [vmem:[%s3 + $0x20] sm:$0xff]
      %v289 = vld [vmem:[%s3 + $0x28] sm:$0xff]
      %v290 = vld [vmem:[%s3 + $0x30] sm:$0xff]
      %vm291 = vcmask 261120
      %v293 = vsel %vm291, %v245, 0
      %v296 = vsel %vm291, %v246, 0
      %v299 = vsel %vm291, %v247, 0
      %v302 = vsel %vm291, %v248, 0
      %v305 = vsel %vm291, %v249, 0
      %v308 = vsel %vm291, %v250, 0
      %v311 = vsel %vm291, %v251, 0
      %v314 = vsel %vm291, %v252, 0
      %v317 = vsel %vm291, %v253, 0
      %v320 = vsel %vm291, %v254, 0
      %v323 = vsel %vm291, %v255, 0
      %v326 = vsel %vm291, %v256, 0
      %v329 = vsel %vm291, %v257, 0
      %v332 = vsel %vm291, %v258, 0
      %v335 = vsel %vm291, %v259, 0
      %v338 = vsel %vm291, %v260, 0
      %v341 = vsel %vm291, %v261, 0
      %v344 = vsel %vm291, %v262, 0
      %v347 = vsel %vm291, %v263, 0
      %v350 = vsel %vm291, %v264, 0
      %v353 = vsel %vm291, %v265, 0
      %v356 = vsel %vm291, %v266, 0
      %v359 = vsel %vm291, %v267, 0
      %361 = vmatprep.subr.mxu0 0.0
      %362 = vmatpush1.xpose.msra.mxu0 %v314
      %363 = vmatprep.subr.mxu0 0.0
      %364 = vmatpush1.xpose.msra.mxu0 %v317
      %365 = vmatprep.subr.mxu0 0.0
      %366 = vmatpush1.xpose.msra.mxu0 %v320
      %367 = vmatprep.subr.mxu0 0.0
      %368 = vmatpush1.xpose.msra.mxu0 %v323
      %369 = vmatprep.subr.mxu0 0.0
      %370 = vmatpush1.xpose.msra.mxu0 %v326
      %371 = vmatprep.subr.mxu0 0.0
      %372 = vmatpush1.xpose.msra.mxu0 %v329
      %373 = vmatprep.subr.mxu0 0.0
      %374 = vmatpush1.xpose.msra.mxu0 %v332
      %375 = vmatprep.subr.mxu0 0.0
      %376 = vmatpush1.xpose.msra.mxu0 %v335
      %377 = vmatprep.subr.mxu0 0.0
      %378 = vmatpush1.xpose.msra.mxu0 %v338
      %379 = vmatprep.subr.mxu0 0.0
      %380 = vmatpush1.xpose.msra.mxu0 %v341
      %381 = vmatprep.subr.mxu0 0.0
      %382 = vmatpush1.xpose.msra.mxu0 %v344
      %383 = vmatprep.subr.mxu0 0.0
      %384 = vmatpush1.xpose.msra.mxu0 %v347
      %385 = vmatprep.subr.mxu0 0.0
      %386 = vmatpush1.xpose.msra.mxu0 %v350
      %387 = vmatprep.subr.mxu0 0.0
      %388 = vmatpush1.xpose.msra.mxu0 %v353
      %389 = vmatprep.subr.mxu0 0.0
      %390 = vmatpush1.xpose.msra.mxu0 %v356
      %391 = vmatprep.subr.mxu0 0.0
      %392 = vmatpush1.xpose.msra.mxu0 %v359
      %393 = vmatprep.subr.mxu0 0.0
      %394 = vmatpush1.xpose.msra.mxu0 0.0
      %395 = vmatprep.subr.mxu0 0.0
      %396 = vmatpush1.xpose.msra.mxu0 0.0
      %397 = vmatprep.subr.mxu0 0.0
      %398 = vmatpush1.xpose.msra.mxu0 0.0
      %399 = vmatprep.subr.mxu0 0.0
      %400 = vmatpush1.xpose.msra.mxu0 0.0
      %401 = vmatprep.subr.mxu0 0.0
      %402 = vmatpush1.xpose.msra.mxu0 0.0
      %403 = vmatprep.subr.mxu0 0.0
      %404 = vmatpush1.xpose.msra.mxu0 0.0
      %405 = vmatprep.subr.mxu0 0.0
      %406 = vmatpush1.xpose.msra.mxu0 0.0
      %407 = vmatprep.subr.mxu0 0.0
      %408 = vmatpush1.xpose.msra.mxu0 0.0
      %409 = vmatprep.subr.mxu0 0.0
      %410 = vmatpush1.xpose.msra.mxu0 0.0
      %411 = vmatprep.subr.mxu0 0.0
      %412 = vmatpush1.xpose.msra.mxu0 0.0
      %413 = vmatprep.subr.mxu0 0.0
      %414 = vmatpush1.xpose.msra.mxu0 0.0
      %415 = vmatprep.subr.mxu0 0.0
      %416 = vmatpush1.xpose.msra.mxu0 0.0
      %417 = vmatprep.subr.mxu0 0.0
      %418 = vmatpush1.xpose.msra.mxu0 0.0
      %419 = vmatprep.subr.mxu0 0.0
      %420 = vmatpush1.xpose.msra.mxu0 0.0
      %421 = vmatprep.subr.mxu0 0.0
      %422 = vmatpush1.xpose.msra.mxu0 0.0
      %423 = vmatprep.subr.mxu0 0.0
      %424 = vmatpush1.xpose.msra.mxu0 0.0
      %425 = vmatprep.mubr.f32.mxu0 0.0
      %426 = vmatmul.mubr.f32.gmra.mrb[0].mxu0 %v293
      %v427 = vpop.f32.mrb[0].mxu0
      %v428 = vadd.f32 %v284, %v427
      %v429 = vpop.f32.mrb[0].mxu0
      %430 = vmatprep.mubr.f32.mxu0 0.0
      %431 = vmatmul.mubr.f32.gmra.mrb[0].mxu0 %v296
      %v432 = vpop.f32.mrb[0].mxu0
      %v433 = vadd.f32 %v285, %v432
      %v434 = vpop.f32.mrb[0].mxu0
      %435 = vmatprep.mubr.f32.mxu0 0.0
      %436 = vmatmul.mubr.f32.gmra.mrb[0].mxu0 %v299
      %v437 = vpop.f32.mrb[0].mxu0
      %v438 = vadd.f32 %v286, %v437
      %v439 = vpop.f32.mrb[0].mxu0
      %440 = vmatprep.mubr.f32.mxu0 0.0
      %441 = vmatmul.mubr.f32.gmra.mrb[0].mxu0 %v302
      %v442 = vpop.f32.mrb[0].mxu0
      %v443 = vadd.f32 %v287, %v442
      %v444 = vpop.f32.mrb[0].mxu0
      %445 = vmatprep.mubr.f32.mxu0 0.0
      %446 = vmatmul.mubr.f32.gmra.mrb[0].mxu0 %v305
      %v447 = vpop.f32.mrb[0].mxu0
      %v448 = vadd.f32 %v288, %v447
      %v449 = vpop.f32.mrb[0].mxu0
      %450 = vmatprep.mubr.f32.mxu0 0.0
      %451 = vmatmul.mubr.f32.gmra.mrb[0].mxu0 %v308
      %v452 = vpop.f32.mrb[0].mxu0
      %v453 = vadd.f32 %v289, %v452
      %v454 = vpop.f32.mrb[0].mxu0
      %455 = vmatprep.mubr.f32.mxu0 0.0
      %456 = vmatmul.mubr.f32.gmra.mrb[0].mxu0 %v311
      %v457 = vpop.f32.mrb[0].mxu0
      %v458 = vadd.f32 %v290, %v457
      %v459 = vpop.f32.mrb[0].mxu0
      %460 = vdwg.mxu0
      %461 = vmax.xlane.f32.xlu0 %v428
      %v462 = vpop.xlane.xlu0 %461
      %463 = vmax.xlane.f32.xlu0 %v433
      %v464 = vpop.xlane.xlu0 %463
      %465 = vmax.xlane.f32.xlu0 %v438
      %v466 = vpop.xlane.xlu0 %465
      %467 = vmax.xlane.f32.xlu0 %v443
      %v468 = vpop.xlane.xlu0 %467
      %469 = vmax.xlane.f32.xlu0 %v448
      %v470 = vpop.xlane.xlu0 %469
      %471 = vmax.xlane.f32.xlu0 %v453
      %v472 = vpop.xlane.xlu0 %471
      %473 = vmax.xlane.f32.xlu0 %v458
      %v474 = vpop.xlane.xlu0 %473
      %v475 = vsub.f32 %v428, %v462
      %v476 = vsub.f32 %v433, %v464
      %v477 = vsub.f32 %v438, %v466
      %v478 = vsub.f32 %v443, %v468
      %v479 = vsub.f32 %v448, %v470
      %v480 = vsub.f32 %v453, %v472
      %v481 = vsub.f32 %v458, %v474
      %v482 = vmul.f32 %v475, 1.442695
      %v483 = vpow.pop %v482
      %v484 = vmul.f32 %v476, 1.442695
      %v485 = vpow.pop %v484
      %v486 = vmul.f32 %v477, 1.442695
      %v487 = vpow.pop %v486
      %v488 = vmul.f32 %v478, 1.442695
      %v489 = vpow.pop %v488
      %v490 = vmul.f32 %v479, 1.442695
      %v491 = vpow.pop %v490
      %v492 = vmul.f32 %v480, 1.442695
      %v493 = vpow.pop %v492
      %v494 = vmul.f32 %v481, 1.442695
      %v495 = vpow.pop %v494
      %496 = vmatprep.subr.mxu0 0.0
      %497 = vmatpush1.msra.mxu0 %v268
      %498 = vmatprep.subr.mxu0 0.0
      %499 = vmatpush1.msra.mxu0 %v269
      %500 = vmatprep.subr.mxu0 0.0
      %501 = vmatpush1.msra.mxu0 %v270
      %502 = vmatprep.subr.mxu0 0.0
      %503 = vmatpush1.msra.mxu0 %v271
      %504 = vmatprep.subr.mxu0 0.0
      %505 = vmatpush1.msra.mxu0 %v272
      %506 = vmatprep.subr.mxu0 0.0
      %507 = vmatpush1.msra.mxu0 %v273
      %508 = vmatprep.subr.mxu0 0.0
      %509 = vmatpush1.msra.mxu0 %v274
      %510 = vmatprep.subr.mxu0 0.0
      %511 = vmatpush1.msra.mxu0 %v275
      %512 = vmatprep.subr.mxu0 0.0
      %513 = vmatpush1.msra.mxu0 %v276
      %514 = vmatprep.subr.mxu0 0.0
      %515 = vmatpush1.msra.mxu0 %v277
      %516 = vmatprep.subr.mxu0 0.0
      %517 = vmatpush1.msra.mxu0 %v278
      %518 = vmatprep.subr.mxu0 0.0
      %519 = vmatpush1.msra.mxu0 %v279
      %520 = vmatprep.subr.mxu0 0.0
      %521 = vmatpush1.msra.mxu0 %v280
      %522 = vmatprep.subr.mxu0 0.0
      %523 = vmatpush1.msra.mxu0 %v281
      %524 = vmatprep.subr.mxu0 0.0
      %525 = vmatpush1.msra.mxu0 %v282
      %526 = vmatprep.subr.mxu0 0.0
      %527 = vmatpush1.msra.mxu0 %v283
      %528 = vmatprep.subr.mxu0 0.0
      %529 = vmatpush1.msra.mxu0 0.0
      %530 = vmatprep.subr.mxu0 0.0
      %531 = vmatpush1.msra.mxu0 0.0
      %532 = vmatprep.subr.mxu0 0.0
      %533 = vmatpush1.msra.mxu0 0.0
      %534 = vmatprep.subr.mxu0 0.0
      %535 = vmatpush1.msra.mxu0 0.0
      %536 = vmatprep.subr.mxu0 0.0
      %537 = vmatpush1.msra.mxu0 0.0
      %538 = vmatprep.subr.mxu0 0.0
      %539 = vmatpush1.msra.mxu0 0.0
      %540 = vmatprep.subr.mxu0 0.0
      %541 = vmatpush1.msra.mxu0 0.0
      %542 = vmatprep.subr.mxu0 0.0
      %543 = vmatpush1.msra.mxu0 0.0
      %544 = vmatprep.subr.mxu0 0.0
      %545 = vmatpush1.msra.mxu0 0.0
      %546 = vmatprep.subr.mxu0 0.0
      %547 = vmatpush1.msra.mxu0 0.0
      %548 = vmatprep.subr.mxu0 0.0
      %549 = vmatpush1.msra.mxu0 0.0
      %550 = vmatprep.subr.mxu0 0.0
      %551 = vmatpush1.msra.mxu0 0.0
      %552 = vmatprep.subr.mxu0 0.0
      %553 = vmatpush1.msra.mxu0 0.0
      %554 = vmatprep.subr.mxu0 0.0
      %555 = vmatpush1.msra.mxu0 0.0
      %556 = vmatprep.subr.mxu0 0.0
      %557 = vmatpush1.msra.mxu0 0.0
      %558 = vmatprep.subr.mxu0 0.0
      %559 = vmatpush1.msra.mxu0 0.0
      %560 = vmatprep.mubr.f32.mxu0 0.0
      %561 = vmatmul.mubr.f32.gmra.mrb[0].mxu0 %v483
      %v562 = vpop.f32.mrb[0].mxu0
      %v563 = vadd.f32 0.0, %v562
      %v564 = vpop.f32.mrb[0].mxu0
      %565 = vmatprep.mubr.f32.mxu0 0.0
      %566 = vmatmul.mubr.f32.gmra.mrb[0].mxu0 %v485
      %v567 = vpop.f32.mrb[0].mxu0
      %v568 = vadd.f32 0.0, %v567
      %v569 = vpop.f32.mrb[0].mxu0
      %570 = vmatprep.mubr.f32.mxu0 0.0
      %571 = vmatmul.mubr.f32.gmra.mrb[0].mxu0 %v487
      %v572 = vpop.f32.mrb[0].mxu0
      %v573 = vadd.f32 0.0, %v572
      %v574 = vpop.f32.mrb[0].mxu0
      %575 = vmatprep.mubr.f32.mxu0 0.0
      %576 = vmatmul.mubr.f32.gmra.mrb[0].mxu0 %v489
      %v577 = vpop.f32.mrb[0].mxu0
      %v578 = vadd.f32 0.0, %v577
      %v579 = vpop.f32.mrb[0].mxu0
      %580 = vmatprep.mubr.f32.mxu0 0.0
      %581 = vmatmul.mubr.f32.gmra.mrb[0].mxu0 %v491
      %v582 = vpop.f32.mrb[0].mxu0
      %v583 = vadd.f32 0.0, %v582
      %v584 = vpop.f32.mrb[0].mxu0
      %585 = vmatprep.mubr.f32.mxu0 0.0
      %586 = vmatmul.mubr.f32.gmra.mrb[0].mxu0 %v493
      %v587 = vpop.f32.mrb[0].mxu0
      %v588 = vadd.f32 0.0, %v587
      %v589 = vpop.f32.mrb[0].mxu0
      %590 = vmatprep.mubr.f32.mxu0 0.0
      %591 = vmatmul.mubr.f32.gmra.mrb[0].mxu0 %v495
      %v592 = vpop.f32.mrb[0].mxu0
      %v593 = vadd.f32 0.0, %v592
      %v594 = vpop.f32.mrb[0].mxu0
      %595 = vdwg.mxu0
      %v596 = vrcp.pop %v563
      %v597 = vrcp.pop %v568
      %v598 = vrcp.pop %v573
      %v599 = vrcp.pop %v578
      %v600 = vrcp.pop %v583
      %v601 = vrcp.pop %v588
      %v602 = vrcp.pop %v593
      %v603 = vmul.f32 %v563, %v596
      %v604 = vmul.f32 %v568, %v597
      %v605 = vmul.f32 %v573, %v598
      %v606 = vmul.f32 %v578, %v599
      %v607 = vmul.f32 %v583, %v600
      %v608 = vmul.f32 %v588, %v601
      %v609 = vmul.f32 %v593, %v602
      %v610 = vsub.f32 2.0, %v603
      %v611 = vsub.f32 2.0, %v604
      %v612 = vsub.f32 2.0, %v605
      %v613 = vsub.f32 2.0, %v606
      %v614 = vsub.f32 2.0, %v607
      %v615 = vsub.f32 2.0, %v608
      %v616 = vsub.f32 2.0, %v609
      %v617 = vmul.f32 %v596, %v610
      %v618 = vmul.f32 %v597, %v611
      %v619 = vmul.f32 %v598, %v612
      %v620 = vmul.f32 %v599, %v613
      %v621 = vmul.f32 %v600, %v614
      %v622 = vmul.f32 %v601, %v615
      %v623 = vmul.f32 %v602, %v616
      %625 = vset.pattern.permute.xlu0 32
      %626 = vperm.xlu0 %625, %v617
      %v627 = vpop.permute.xlu0 %626
      %630 = vset.pattern.permute.xlu0 32
      %631 = vperm.xlu0 %630, %v618
      %v632 = vpop.permute.xlu0 %631
      %635 = vset.pattern.permute.xlu0 32
      %636 = vperm.xlu0 %635, %v619
      %v637 = vpop.permute.xlu0 %636
      %640 = vset.pattern.permute.xlu0 32
      %641 = vperm.xlu0 %640, %v620
      %v642 = vpop.permute.xlu0 %641
      %645 = vset.pattern.permute.xlu0 32
      %646 = vperm.xlu0 %645, %v621
      %v647 = vpop.permute.xlu0 %646
      %650 = vset.pattern.permute.xlu0 32
      %651 = vperm.xlu0 %650, %v622
      %v652 = vpop.permute.xlu0 %651
      %655 = vset.pattern.permute.xlu0 32
      %656 = vperm.xlu0 %655, %v623
      %v657 = vpop.permute.xlu0 %656
      %v659 = vmul.f32 %v563, %v627
      %v660 = vmul.f32 %v568, %v632
      %v661 = vmul.f32 %v573, %v637
      %v662 = vmul.f32 %v578, %v642
      %v663 = vmul.f32 %v583, %v647
      %v664 = vmul.f32 %v588, %v652
      %v665 = vmul.f32 %v593, %v657
      %666 = vst.msk [vmem:[%s237] sm:$0xff] %vm291, %v659
      %667 = vst.msk [vmem:[%s237 + $0x8] sm:$0xff] %vm291, %v660
      %668 = vst.msk [vmem:[%s237 + $0x10] sm:$0xff] %vm291, %v661
      %669 = vst.msk [vmem:[%s237 + $0x18] sm:$0xff] %vm291, %v662
      %670 = vst.msk [vmem:[%s237 + $0x20] sm:$0xff] %vm291, %v663
      %671 = vst.msk [vmem:[%s237 + $0x28] sm:$0xff] %vm291, %v664
      %672 = vst.msk [vmem:[%s237 + $0x30] sm:$0xff] %vm291, %v665
      %p673 = scmp.lt.s32.totalorder %s15, 1
      %s674 = scalar_select %p673, %s15, 1
      %s675 = smul.addr %s674, 7
      %s676 = smul.addr %s675, 8
      %s677 = scalar_lea.vmem %s4, %s676
      // Predicated region
      $region37: #{tpu_custom_call.1} parent=35 // pred_check
        %p678 = pneg %p132
      $region38: #{tpu_custom_call.1} parent=35 // pred_check_branch
        %680 = sbr.rel (%p678) target = $region40
      $region39: #{tpu_custom_call.1} parent=35 // pred_region
        _
      $region40: #{tpu_custom_call.1} parent=35 // pred_fallthru
        _
    $region36: #{tpu_custom_call.1} parent=5 // pred_fallthru
      _
    %p681 = scmp.le.s32.totalorder 2, %s10
    // Predicated region
    $region41: #{tpu_custom_call.1} parent=5 // pred_check
      %p682 = pneg %p681
    $region42: #{tpu_custom_call.1} parent=5 // pred_check_branch
      %684 = sbr.rel (%p682) target = $region44
    $region43: #{tpu_custom_call.1} parent=5 // pred_region
      %s685 = ssub.s32 %s10, 2
      // Predicated region
      $region45: #{tpu_custom_call.1} parent=43 // pred_check
        %p686 = pneg %p138
      $region46: #{tpu_custom_call.1} parent=43 // pred_check_branch
        %688 = sbr.rel (%p686) target = $region48
      $region47: #{tpu_custom_call.1} parent=43 // pred_region
        %p689 = scmp.lt.s32.totalorder %s16, 1
        %s690 = scalar_select %p689, %s16, 1
        %s691 = smul.addr %s690, 7
        %s692 = smul.addr %s691, 8
        %s693 = scalar_lea.vmem %s4, %s692
      $region48: #{tpu_custom_call.1} parent=43 // pred_fallthru
        _
    $region44: #{tpu_custom_call.1} parent=5 // pred_fallthru
      _
  $region6: #{tpu_custom_call.1} parent=0 // loop_footer
    %s14 = sadd.s32 1, %s10
  $region7: #{tpu_custom_call.1} parent=0 // loop_footer_branch
    %9 = sbr.rel target = $region3
  $region8: #{tpu_custom_call.1} parent=0 // loop_exit
    _

</llo_original>
